<compile_context>
chip_gen: v7x
topology: tpu7x:2x2x1
jax: 0.10.0
libtpu: 0.0.40
codegen_flags: <defaults>
</compile_context>

<pallas_src>
import functools

import jax
import jax.numpy as jnp
from jax.experimental import pallas as pl
from jax.experimental.pallas import tpu as pltpu

_LOG2E = 1.4426950408889634  # log2(e): folded into wq so the softmax uses exp2.
_LANES = 128                 # lane width: m/l running stats are lane-dense.


def _qkv_proj_kernel(xq_ref, xkv_ref, wq_ref, wk_ref, wv_ref,
                     q_ref, k_ref, v_ref):
    """Project Q / K / V once (grid: batch x token-tile). bf16 operands and
    outputs, f32 accumulation. wq already carries scale * log2(e)."""
    xq = xq_ref[0]                                               # (tp, C) bf16
    xkv = xkv_ref[0]                                             # (tp, C) bf16
    q_ref[0] = jnp.dot(xq, wq_ref[...],
                       preferred_element_type=jnp.float32).astype(q_ref.dtype)
    k_ref[0] = jnp.dot(xkv, wk_ref[...],
                       preferred_element_type=jnp.float32).astype(k_ref.dtype)
    v_ref[0] = jnp.dot(xkv, wv_ref[...],
                       preferred_element_type=jnp.float32).astype(v_ref.dtype)


def _flash_attn_kernel(q_ref, k_ref, v_ref, wproj_ref, bproj_ref, o_ref,
                       acc_scratch, m_scratch, l_scratch,
                       *, num_heads, head_dim):
    """Grid: (batch, q_tile, kv_tile). Online-softmax (exp2 form) accumulation
    over the kv axis; at the last kv step normalize and apply the fused output
    projection + bias."""
    kv_idx = pl.program_id(2)
    last_kv = pl.num_programs(2) - 1

    @pl.when(kv_idx == 0)
    def _init():
        m_scratch[...] = jnp.full_like(m_scratch, -jnp.inf)
        l_scratch[...] = jnp.zeros_like(l_scratch)
        acc_scratch[...] = jnp.zeros_like(acc_scratch)

    q = q_ref[0]                                                 # (tq, C)  bf16
    k = k_ref[0]                                                 # (tkv, C) bf16
    v = v_ref[0]                                                 # (tkv, C) bf16

    # Per-head online-softmax update. num_heads is small and static, so the
    # Python loop is fully unrolled; each head is a plain 2-D dot over a
    # static lane slice (tile-aligned and free when head_dim >= 128).
    for h in range(num_heads):
        lo = h * head_dim
        hi = lo + head_dim
        q_h = q[:, lo:hi]                                        # (tq, hd)
        k_h = k[:, lo:hi]                                        # (tkv, hd)
        v_h = v[:, lo:hi]                                        # (tkv, hd)

        # s[i, j] = sum_d q[i, d] * k[j, d]; scale * log2(e) is already in q.
        s = jax.lax.dot_general(q_h, k_h, (((1,), (1,)), ((), ())),
                                preferred_element_type=jnp.float32)  # (tq, tkv)

        m_prev = m_scratch[h]                                    # (tq, 128)
        l_prev = l_scratch[h]                                    # (tq, 128)
        m_curr = jnp.max(s, axis=-1, keepdims=True)              # (tq, 1)
        m_next = jnp.maximum(m_prev, m_curr)                     # (tq, 128)
        alpha = jnp.exp2(m_prev - m_next)                        # (tq, 128)
        p = jnp.exp2(s - m_next[:, 0:1])                         # (tq, tkv) f32

        l_scratch[h] = alpha * l_prev + jnp.sum(p, axis=-1, keepdims=True)
        acc_scratch[h] = alpha[:, 0:1] * acc_scratch[h] + jnp.dot(
            p.astype(v_h.dtype), v_h, preferred_element_type=jnp.float32)
        m_scratch[h] = m_next

    @pl.when(kv_idx == last_kv)
    def _finalize():
        # Normalize each head (approx reciprocal -> EUP slot, not a VALU
        # divide), reassemble (tq, C), and fuse the output projection + bias
        # so the attention output never touches HBM. attn_drop / proj_drop
        # are p=0.0 (identity) — nothing to do.
        outs = []
        for h in range(num_heads):
            inv_l = pl.reciprocal(l_scratch[h][:, 0:1], approx=True)   # (tq, 1)
            outs.append(acc_scratch[h] * inv_l)                        # (tq, hd)
        attn_out = jnp.concatenate(outs, axis=-1).astype(jnp.bfloat16)  # (tq, C)
        proj = jnp.dot(attn_out, wproj_ref[...],
                       preferred_element_type=jnp.float32) + bproj_ref[...]
        o_ref[0] = proj.astype(o_ref.dtype)


def _pick_tile(n, target, align):
    """Largest divisor of n that is <= target and a multiple of `align`
    (falls back to 8-aligned divisors, then to the full axis, so tiled blocks
    always satisfy the (8, 128) sublane/lane constraint)."""
    if n <= target:
        return n
    for a in (align, 8):
        t = (target // a) * a
        while t >= a:
            if n % t == 0:
                return t
            t -= a
    return n


def cross_attention(x, w_q, w_k, w_v, w_proj, b_proj, *, num_heads,
                    q_tile=256, kv_tile=256, proj_tile=512,
                    vmem_limit_bytes=48 * 1024 * 1024):
    """x: (B, N, C); w_q / w_k / w_v / w_proj: (C, C) (in, out); b_proj: (1, C).
    Returns (B, N//2, C).

    Tile defaults target the 256x256 MXU of v6e/v7x. On v5e/v6e (128 MiB VMEM)
    q_tile/kv_tile can be swept up to 512; on v7x (64 MiB/TC) keep 256-class
    tiles and make sure B * (M // q_tile) >= 2 so both TensorCores get work.
    """
    B, N, C = x.shape
    assert N % 2 == 0, "sequence length must be even (cross-attn split)"
    M = N // 2
    head_dim = C // num_heads
    assert head_dim * num_heads == C, "C must be divisible by num_heads"
    scale = head_dim ** (-0.5)

    # kv tile: lane dim of the score tile / contraction dim of P@V -> 128-
    # aligned; q tile: bf16 sublane packing -> 16-aligned.
    tq = _pick_tile(M, q_tile, 16)
    tkv = _pick_tile(M, kv_tile, 128)
    tp = _pick_tile(M, proj_tile, 8)

    # bf16 activation streaming (halves HBM->VMEM DMA for every block).
    x_bf = x.astype(jnp.bfloat16)
    xq = x_bf[:, :M, :]       # query half
    xkv = x_bf[:, M:, :]      # key / value half

    # One-time weight transforms at trace time:
    #  * fold the attention scale AND log2(e) into wq (exp2 softmax),
    #  * store all weights as bf16 (MXU operand dtype; halves VMEM/HBM).
    wq_b = (w_q * jnp.float32(scale * _LOG2E)).astype(jnp.bfloat16)
    wk_b = w_k.astype(jnp.bfloat16)
    wv_b = w_v.astype(jnp.bfloat16)
    wp_b = w_proj.astype(jnp.bfloat16)
    bp = b_proj.astype(jnp.float32)

    # ---- Pass 1: project Q / K / V exactly once (hoisted out of the kv loop).
    q, k, v = pl.pallas_call(
        _qkv_proj_kernel,
        out_shape=(
            jax.ShapeDtypeStruct((B, M, C), jnp.bfloat16),
            jax.ShapeDtypeStruct((B, M, C), jnp.bfloat16),
            jax.ShapeDtypeStruct((B, M, C), jnp.bfloat16),
        ),
        grid_spec=pltpu.PrefetchScalarGridSpec(
            num_scalar_prefetch=0,
            grid=(B, M // tp),
            in_specs=[
                pl.BlockSpec((1, tp, C), lambda b, i: (b, i, 0)),   # x (query half)
                pl.BlockSpec((1, tp, C), lambda b, i: (b, i, 0)),   # x (kv half)
                pl.BlockSpec((C, C), lambda b, i: (0, 0)),          # wq (scaled)
                pl.BlockSpec((C, C), lambda b, i: (0, 0)),          # wk
                pl.BlockSpec((C, C), lambda b, i: (0, 0)),          # wv
            ],
            out_specs=[
                pl.BlockSpec((1, tp, C), lambda b, i: (b, i, 0)),
                pl.BlockSpec((1, tp, C), lambda b, i: (b, i, 0)),
                pl.BlockSpec((1, tp, C), lambda b, i: (b, i, 0)),
            ],
        ),
        compiler_params=pltpu.CompilerParams(
            dimension_semantics=("parallel", "parallel"),
            vmem_limit_bytes=vmem_limit_bytes,
        ),
    )(xq, xkv, wq_b, wk_b, wv_b)

    # ---- Pass 2: flash attention + fused output projection.
    kernel = functools.partial(_flash_attn_kernel,
                               num_heads=num_heads, head_dim=head_dim)

    return pl.pallas_call(
        kernel,
        out_shape=jax.ShapeDtypeStruct((B, M, C), x.dtype),
        grid_spec=pltpu.PrefetchScalarGridSpec(
            num_scalar_prefetch=0,
            grid=(B, M // tq, M // tkv),
            in_specs=[
                pl.BlockSpec((1, tq, C), lambda b, i, j: (b, i, 0)),   # Q (bf16)
                pl.BlockSpec((1, tkv, C), lambda b, i, j: (b, j, 0)),  # K (bf16)
                pl.BlockSpec((1, tkv, C), lambda b, i, j: (b, j, 0)),  # V (bf16)
                # Constant-index weight/bias blocks: DMA'd once by the pipeline.
                # On VMEM-tight targets (v7x with large C) they can additionally
                # be single-buffered (pipeline_mode=pl.Buffered(1)) or wproj can
                # be un-fused into a plain XLA matmul as a VMEM escape hatch.
                pl.BlockSpec((C, C), lambda b, i, j: (0, 0)),          # wproj
                pl.BlockSpec((1, C), lambda b, i, j: (0, 0)),          # bproj
            ],
            out_specs=pl.BlockSpec((1, tq, C), lambda b, i, j: (b, i, 0)),
            scratch_shapes=[
                pltpu.VMEM((num_heads, tq, head_dim), jnp.float32),    # acc
                pltpu.VMEM((num_heads, tq, _LANES), jnp.float32),      # running max
                pltpu.VMEM((num_heads, tq, _LANES), jnp.float32),      # running sum
            ],
        ),
        compiler_params=pltpu.CompilerParams(
            # kv (reduction) axis last & arbitrary; batch / q-tiles parallel.
            dimension_semantics=("parallel", "parallel", "arbitrary"),
            vmem_limit_bytes=vmem_limit_bytes,
        ),
    )(q, k, v, wp_b, bp)


def cross_attention_ref(x, w_q, w_k, w_v, w_proj, b_proj, *, num_heads):
    """Pure-JAX f32 reference mirroring the PyTorch forward exactly."""
    B, N, C = x.shape
    M = N // 2
    hd = C // num_heads
    scale = hd ** (-0.5)
    xq, xkv = x[:, :M], x[:, M:]
    q = (xq @ w_q).reshape(B, M, num_heads, hd).transpose(0, 2, 1, 3)
    k = (xkv @ w_k).reshape(B, M, num_heads, hd).transpose(0, 2, 1, 3)
    v = (xkv @ w_v).reshape(B, M, num_heads, hd).transpose(0, 2, 1, 3)
    attn = (q @ jnp.swapaxes(k, -1, -2)) * scale                      # (B, H, M, M)
    attn = jax.nn.softmax(attn, axis=-1)
    out = (attn @ v).transpose(0, 2, 1, 3).reshape(B, M, C)
    return out @ w_proj + b_proj[0]


if __name__ == "__main__":
    # Small but lane-dense shapes: C multiple of 128 so stores are unmasked.
    B, N, C = 2, 16, 128
    num_heads = 4

    key = jax.random.PRNGKey(0)
    kx, kq, kk, kv, kp, kb = jax.random.split(key, 6)

    x = jax.random.normal(kx, (B, N, C), dtype=jnp.float32)
    w_q = jax.random.normal(kq, (C, C), dtype=jnp.float32) * 0.02
    w_k = jax.random.normal(kk, (C, C), dtype=jnp.float32) * 0.02
    w_v = jax.random.normal(kv, (C, C), dtype=jnp.float32) * 0.02
    w_proj = jax.random.normal(kp, (C, C), dtype=jnp.float32) * 0.02
    b_proj = jax.random.normal(kb, (1, C), dtype=jnp.float32) * 0.02

    out = cross_attention(x, w_q, w_k, w_v, w_proj, b_proj, num_heads=num_heads)
    out = jax.block_until_ready(out)

    ref = cross_attention_ref(x, w_q, w_k, w_v, w_proj, b_proj,
                              num_heads=num_heads)
    assert out.shape == (B, N // 2, C)
    # bf16 MXU operands + approx reciprocal (f32 accumulation) -> small
    # deviation vs the f32 reference.
    assert jnp.allclose(out, ref, atol=2e-2, rtol=2e-2), "mismatch vs reference"

    print("KERNEL_OK")
</pallas_src>

<mosaic_0001>
module attributes {stable_mosaic.version = 11 : i64} {
  func.func @_qkv_proj_kernel(%arg0: i32, %arg1: i32, %arg2: memref<1x8x128xbf16, #tpu.memory_space<vmem>>, %arg3: memref<1x8x128xbf16, #tpu.memory_space<vmem>>, %arg4: memref<128x128xbf16, #tpu.memory_space<vmem>>, %arg5: memref<128x128xbf16, #tpu.memory_space<vmem>>, %arg6: memref<128x128xbf16, #tpu.memory_space<vmem>>, %arg7: memref<1x8x128xbf16, #tpu.memory_space<vmem>>, %arg8: memref<1x8x128xbf16, #tpu.memory_space<vmem>>, %arg9: memref<1x8x128xbf16, #tpu.memory_space<vmem>>) attributes {dimension_semantics = [#tpu.dimension_semantics<parallel>, #tpu.dimension_semantics<parallel>], iteration_bounds = array<i64: 2, 1>, scalar_prefetch = 0 : i64, scratch_operands = 0 : i64, tpu.core_type = #tpu.core_type<tc>, window_params = [{transform_indices = @transform_0, window_bounds = array<i64: 1, 8, 128>}, {transform_indices = @transform_1, window_bounds = array<i64: 1, 8, 128>}, {pipeline_mode = #tpu.pipeline_mode<synchronous>, transform_indices = @transform_2, window_bounds = array<i64: 128, 128>}, {pipeline_mode = #tpu.pipeline_mode<synchronous>, transform_indices = @transform_3, window_bounds = array<i64: 128, 128>}, {pipeline_mode = #tpu.pipeline_mode<synchronous>, transform_indices = @transform_4, window_bounds = array<i64: 128, 128>}, {transform_indices = @transform_5, window_bounds = array<i64: 1, 8, 128>}, {transform_indices = @transform_6, window_bounds = array<i64: 1, 8, 128>}, {transform_indices = @transform_7, window_bounds = array<i64: 1, 8, 128>}]} {
    %c0 = arith.constant 0 : index
    %c0_0 = arith.constant 0 : index
    %c0_1 = arith.constant 0 : index
    %0 = vector.load %arg2[%c0, %c0_0, %c0_1] : memref<1x8x128xbf16, #tpu.memory_space<vmem>>, vector<1x8x128xbf16>
    %1 = vector.shape_cast %0 : vector<1x8x128xbf16> to vector<8x128xbf16>
    %c0_2 = arith.constant 0 : index
    %c0_3 = arith.constant 0 : index
    %c0_4 = arith.constant 0 : index
    %2 = vector.load %arg3[%c0_2, %c0_3, %c0_4] : memref<1x8x128xbf16, #tpu.memory_space<vmem>>, vector<1x8x128xbf16>
    %3 = vector.shape_cast %2 : vector<1x8x128xbf16> to vector<8x128xbf16>
    %c0_5 = arith.constant 0 : index
    %c0_6 = arith.constant 0 : index
    %4 = vector.load %arg4[%c0_5, %c0_6] : memref<128x128xbf16, #tpu.memory_space<vmem>>, vector<128x128xbf16>
    %cst = arith.constant dense<0.000000e+00> : vector<8x128xf32>
    %5 = tpu.matmul %1, %4, %cst {dimension_numbers = #tpu.dot_dimension_numbers<[1], [0], [0], [1], [0, 0, 1, 1], [], []>} : vector<8x128xbf16>, vector<128x128xbf16>, vector<8x128xf32> -> vector<8x128xf32>
    %6 = arith.truncf %5 : vector<8x128xf32> to vector<8x128xbf16>
    %c0_7 = arith.constant 0 : index
    %c0_8 = arith.constant 0 : index
    %c0_9 = arith.constant 0 : index
    %7 = vector.load %arg7[%c0_7, %c0_8, %c0_9] : memref<1x8x128xbf16, #tpu.memory_space<vmem>>, vector<1x8x128xbf16>
    %8 = vector.shape_cast %7 : vector<1x8x128xbf16> to vector<8x128xbf16>
    %9 = vector.shape_cast %6 : vector<8x128xbf16> to vector<1x8x128xbf16>
    tpu.vector_store %arg7[%c0_7, %c0_8, %c0_9], %9 {strides = array<i32>} : memref<1x8x128xbf16, #tpu.memory_space<vmem>>, vector<1x8x128xbf16>,
    %c0_10 = arith.constant 0 : index
    %c0_11 = arith.constant 0 : index
    %10 = vector.load %arg5[%c0_10, %c0_11] : memref<128x128xbf16, #tpu.memory_space<vmem>>, vector<128x128xbf16>
    %cst_12 = arith.constant dense<0.000000e+00> : vector<8x128xf32>
    %11 = tpu.matmul %3, %10, %cst_12 {dimension_numbers = #tpu.dot_dimension_numbers<[1], [0], [0], [1], [0, 0, 1, 1], [], []>} : vector<8x128xbf16>, vector<128x128xbf16>, vector<8x128xf32> -> vector<8x128xf32>
    %12 = arith.truncf %11 : vector<8x128xf32> to vector<8x128xbf16>
    %c0_13 = arith.constant 0 : index
    %c0_14 = arith.constant 0 : index
    %c0_15 = arith.constant 0 : index
    %13 = vector.load %arg8[%c0_13, %c0_14, %c0_15] : memref<1x8x128xbf16, #tpu.memory_space<vmem>>, vector<1x8x128xbf16>
    %14 = vector.shape_cast %13 : vector<1x8x128xbf16> to vector<8x128xbf16>
    %15 = vector.shape_cast %12 : vector<8x128xbf16> to vector<1x8x128xbf16>
    tpu.vector_store %arg8[%c0_13, %c0_14, %c0_15], %15 {strides = array<i32>} : memref<1x8x128xbf16, #tpu.memory_space<vmem>>, vector<1x8x128xbf16>,
    %c0_16 = arith.constant 0 : index
    %c0_17 = arith.constant 0 : index
    %16 = vector.load %arg6[%c0_16, %c0_17] : memref<128x128xbf16, #tpu.memory_space<vmem>>, vector<128x128xbf16>
    %cst_18 = arith.constant dense<0.000000e+00> : vector<8x128xf32>
    %17 = tpu.matmul %3, %16, %cst_18 {dimension_numbers = #tpu.dot_dimension_numbers<[1], [0], [0], [1], [0, 0, 1, 1], [], []>} : vector<8x128xbf16>, vector<128x128xbf16>, vector<8x128xf32> -> vector<8x128xf32>
    %18 = arith.truncf %17 : vector<8x128xf32> to vector<8x128xbf16>
    %c0_19 = arith.constant 0 : index
    %c0_20 = arith.constant 0 : index
    %c0_21 = arith.constant 0 : index
    %19 = vector.load %arg9[%c0_19, %c0_20, %c0_21] : memref<1x8x128xbf16, #tpu.memory_space<vmem>>, vector<1x8x128xbf16>
    %20 = vector.shape_cast %19 : vector<1x8x128xbf16> to vector<8x128xbf16>
    %21 = vector.shape_cast %18 : vector<8x128xbf16> to vector<1x8x128xbf16>
    tpu.vector_store %arg9[%c0_19, %c0_20, %c0_21], %21 {strides = array<i32>} : memref<1x8x128xbf16, #tpu.memory_space<vmem>>, vector<1x8x128xbf16>,
    return
  }
  func.func @transform_0(%arg0: i32, %arg1: i32) -> (i32, i32, i32) {
    %c0_i32 = arith.constant 0 : i32
    %c0_i32_0 = arith.constant 0 : i32
    return %arg0, %arg1, %c0_i32 : i32, i32, i32
  }
  func.func @transform_1(%arg0: i32, %arg1: i32) -> (i32, i32, i32) {
    %c0_i32 = arith.constant 0 : i32
    %c0_i32_0 = arith.constant 0 : i32
    return %arg0, %arg1, %c0_i32 : i32, i32, i32
  }
  func.func @transform_2(%arg0: i32, %arg1: i32) -> (i32, i32) {
    %c0_i32 = arith.constant 0 : i32
    %c0_i32_0 = arith.constant 0 : i32
    %c0_i32_1 = arith.constant 0 : i32
    return %c0_i32, %c0_i32_0 : i32, i32
  }
  func.func @transform_3(%arg0: i32, %arg1: i32) -> (i32, i32) {
    %c0_i32 = arith.constant 0 : i32
    %c0_i32_0 = arith.constant 0 : i32
    %c0_i32_1 = arith.constant 0 : i32
    return %c0_i32, %c0_i32_0 : i32, i32
  }
  func.func @transform_4(%arg0: i32, %arg1: i32) -> (i32, i32) {
    %c0_i32 = arith.constant 0 : i32
    %c0_i32_0 = arith.constant 0 : i32
    %c0_i32_1 = arith.constant 0 : i32
    return %c0_i32, %c0_i32_0 : i32, i32
  }
  func.func @transform_5(%arg0: i32, %arg1: i32) -> (i32, i32, i32) {
    %c0_i32 = arith.constant 0 : i32
    %c0_i32_0 = arith.constant 0 : i32
    return %arg0, %arg1, %c0_i32 : i32, i32, i32
  }
  func.func @transform_6(%arg0: i32, %arg1: i32) -> (i32, i32, i32) {
    %c0_i32 = arith.constant 0 : i32
    %c0_i32_0 = arith.constant 0 : i32
    return %arg0, %arg1, %c0_i32 : i32, i32, i32
  }
  func.func @transform_7(%arg0: i32, %arg1: i32) -> (i32, i32, i32) {
    %c0_i32 = arith.constant 0 : i32
    %c0_i32_0 = arith.constant 0 : i32
    return %arg0, %arg1, %c0_i32 : i32, i32, i32
  }
}

</mosaic_0001>

<llo_original>
// kernel: tpu_custom_call.1
$region0: #{tpu_custom_call.1}
  #allocation0 [shape = 'u32[]', space=smem, size = 0x4, offset = 0x4, fixed_abs, tag = 'smem constant byte address 0x4 - core index']
  #allocation1 [shape = 'u32[144,128]{1,0:T(1,128)}', space=vmem, size = 0x12000, scoped, tag = 'internal scratch']
  %s0 = inlined_call_operand.hbm [shape: bf16[2,8,128], index: 0, kind: input, shape index: {}]
  %s1 = inlined_call_operand.hbm [shape: bf16[2,8,128], index: 1, kind: input, shape index: {}]
  %s2 = inlined_call_operand.hbm [shape: bf16[128,128], index: 2, kind: input, shape index: {}]
  %s3 = inlined_call_operand.hbm [shape: bf16[128,128], index: 3, kind: input, shape index: {}]
  %s4 = inlined_call_operand.hbm [shape: bf16[128,128], index: 4, kind: input, shape index: {}]
  %s5 = inlined_call_operand.hbm [shape: bf16[2,8,128], index: 5, kind: output, shape index: {0}]
  %s6 = inlined_call_operand.hbm [shape: bf16[2,8,128], index: 6, kind: output, shape index: {1}]
  %s7 = inlined_call_operand.hbm [shape: bf16[2,8,128], index: 7, kind: output, shape index: {2}]
  %8 = xla_tuple %s5, %s6, %s7
  %s9 = sld [smem:[#allocation0]]
  $region89: #{tpu_custom_call.1} parent=0
    _
  %s11 = ssub.s32 1, %s9
  %s12 = scalar_select 0, %s11, %s9
  $region1: #{tpu_custom_call.1} parent=0
    #allocation2 [shape = 'u8[4096]{0}', space=vmem, size = 0x1000, scoped, tag = 'input window, operand 0']
    #allocation3 [shape = 's32[2]{0}', space=sflag, size = 0x8, scoped, tag = 'scoped memory for tpu_custom_call.1']
    #allocation4 [shape = 's32[2]{0}', space=sflag, size = 0x8, scoped, tag = 'scoped memory for tpu_custom_call.1']
    #allocation5 [shape = 'u8[4096]{0}', space=vmem, size = 0x1000, scoped, tag = 'input window, operand 1']
    #allocation6 [shape = 's32[2]{0}', space=sflag, size = 0x8, scoped, tag = 'scoped memory for tpu_custom_call.1']
    #allocation7 [shape = 'u8[32768]{0}', space=vmem, size = 0x8000, scoped, tag = 'input window, operand 2, single buffered']
    #allocation8 [shape = 'u8[32768]{0}', space=vmem, size = 0x8000, scoped, tag = 'input window, operand 3, single buffered']
    #allocation9 [shape = 's32[1]{0}', space=sflag, size = 0x4, scoped, tag = 'scoped memory for tpu_custom_call.1']
    #allocation10 [shape = 'u8[32768]{0}', space=vmem, size = 0x8000, scoped, tag = 'input window, operand 4, single buffered']
    #allocation11 [shape = 'u8[4096]{0}', space=vmem, size = 0x1000, scoped, tag = 'output window, operand 0']
    #allocation12 [shape = 'u8[4096]{0}', space=vmem, size = 0x1000, scoped, tag = 'output window, operand 1']
    #allocation13 [shape = 's32[2]{0}', space=sflag, size = 0x8, scoped, tag = 'scoped memory for tpu_custom_call.1']
    #allocation14 [shape = 'u8[4096]{0}', space=vmem, size = 0x1000, scoped, tag = 'output window, operand 2']
    %13 = vsyncpa [#allocation3], 0
    %s14 = scalar_lea.sflag [#allocation3], 1
    %15 = vsyncpa %s14, 0
    %16 = vsyncpa [#allocation6], 0
    %s17 = scalar_lea.sflag [#allocation6], 1
    %18 = vsyncpa %s17, 0
    %19 = vsyncpa [#allocation9], 0
    %20 = vsyncpa [#allocation4], 0
    %s21 = scalar_lea.sflag [#allocation4], 1
    %22 = vsyncpa %s21, 0
    %23 = vsyncpa [#allocation13], 0
    %s24 = scalar_lea.sflag [#allocation13], 1
    %25 = vsyncpa %s24, 0
    loop: start=0, step=1, limit=4
    $region2: #{tpu_custom_call.1} parent=1 // loop_pre_header
      _
    $region3: #{tpu_custom_call.1} parent=1 // loop_header
      %s27 = sphi 0, %s31
      %p28 = scmp.ge.s32.totalorder %s27, 4
      %s34 = sphi 0, %s46
      %s35 = sphi 0, %s42
      %s36 = sphi 0, %s34
      %s37 = sphi 0, %s35
      %s38 = sphi 0, %s36
      %s39 = sphi 0, %s37
      %s51 = sphi 0, %s53
      %s54 = sphi 0, %s51
      %s55 = sphi 0, %s54
      %s71 = sphi 0, %s55
      %s79 = sphi 0, %s81
      %s82 = sphi 0, %s79
      %s83 = sphi 0, %s82
      %s99 = sphi 0, %s83
      %s103 = sphi 0, %s103
      %s105 = sphi 0, %s103
      %s106 = sphi 0, %s105
      %s120 = sphi 0, %s106
      %s124 = sphi 0, %s124
      %s126 = sphi 0, %s124
      %s127 = sphi 0, %s126
      %s141 = sphi 0, %s127
      %s145 = sphi 0, %s145
      %s147 = sphi 0, %s145
      %s148 = sphi 0, %s147
      %s162 = sphi 0, %s148
      %s170 = sphi 0, %s172
      %s173 = sphi 0, %s170
      %s174 = sphi 0, %s173
      %s190 = sphi 0, %s174
      %s198 = sphi 0, %s200
      %s201 = sphi 0, %s198
      %s202 = sphi 0, %s201
      %s218 = sphi 0, %s202
      %s226 = sphi 0, %s228
      %s229 = sphi 0, %s226
      %s230 = sphi 0, %s229
      %s246 = sphi 0, %s230
    $region4: #{tpu_custom_call.1} parent=1 // loop_header_branch
      %30 = sbr.rel (%p28) target = $region8
    $region5: #{tpu_custom_call.1} parent=1 // loop_body
      %s32 = ssub.s32 %s27, 1
      %s33 = ssub.s32 %s27, 2
      %s40 = sadd.s32 1, %s35
      %p41 = scmp.ge.s32.totalorder %s40, 1
      %s42 = scalar_select %p41, 0, %s40
      %s43 = sadd.s32 1, %s34
      %s44 = scalar_select %p41, %s43, %s34
      %p45 = scmp.ge.s32.totalorder %s44, 2
      %s46 = scalar_select %p45, 0, %s44
      %s47 = ssub.s32 %s34, %s46
      %s48 = ssub.s32 %s35, %s42
      %s49 = sor.u32 %s47, %s48
      %p50 = scmp.eq.s32.totalorder %s49, 0
      %s52 = sadd.s32 %s51, 1
      %s53 = scalar_select %p50, %s51, %s52
      %p56 = pneg %p50
      %p57 = scmp.eq.s32.totalorder %s27, 1
      %p58 = por %p56, %p57
      %p59 = scmp.ne.s32.totalorder %s51, %s54
      %p60 = scmp.eq.s32.totalorder %s27, 0
      %p61 = por %p59, %p60
      %p62 = scmp.ne.s32.totalorder %s51, %s54
      %p63 = scmp.eq.s32.totalorder %s32, 1
      %p64 = por %p62, %p63
      %p65 = scmp.ne.s32.totalorder %s54, %s55
      %p66 = scmp.eq.s32.totalorder %s32, 0
      %p67 = por %p65, %p66
      %p68 = scmp.ne.s32.totalorder %s54, %s55
      %p69 = scmp.eq.s32.totalorder %s33, 1
      %p70 = por %p68, %p69
      %p72 = scmp.ne.s32.totalorder %s55, %s71
      %p73 = scmp.eq.s32.totalorder %s33, 0
      %p74 = por %p72, %p73
      %s75 = ssub.s32 %s34, %s46
      %s76 = ssub.s32 %s35, %s42
      %s77 = sor.u32 %s75, %s76
      %p78 = scmp.eq.s32.totalorder %s77, 0
      %s80 = sadd.s32 %s79, 1
      %s81 = scalar_select %p78, %s79, %s80
      %p84 = pneg %p78
      %p85 = scmp.eq.s32.totalorder %s27, 1
      %p86 = por %p84, %p85
      %p87 = scmp.ne.s32.totalorder %s79, %s82
      %p88 = scmp.eq.s32.totalorder %s27, 0
      %p89 = por %p87, %p88
      %p90 = scmp.ne.s32.totalorder %s79, %s82
      %p91 = scmp.eq.s32.totalorder %s32, 1
      %p92 = por %p90, %p91
      %p93 = scmp.ne.s32.totalorder %s82, %s83
      %p94 = scmp.eq.s32.totalorder %s32, 0
      %p95 = por %p93, %p94
      %p96 = scmp.ne.s32.totalorder %s82, %s83
      %p97 = scmp.eq.s32.totalorder %s33, 1
      %p98 = por %p96, %p97
      %p100 = scmp.ne.s32.totalorder %s83, %s99
      %p101 = scmp.eq.s32.totalorder %s33, 0
      %p102 = por %p100, %p101
      %s104 = sadd.s32 %s103, 1
      %p107 = scmp.eq.s32.totalorder %s27, 1
      %p108 = scmp.ne.s32.totalorder %s103, %s105
      %p109 = scmp.eq.s32.totalorder %s27, 0
      %p110 = por %p108, %p109
      %p111 = scmp.ne.s32.totalorder %s103, %s105
      %p112 = scmp.eq.s32.totalorder %s32, 1
      %p113 = por %p111, %p112
      %p114 = scmp.ne.s32.totalorder %s105, %s106
      %p115 = scmp.eq.s32.totalorder %s32, 0
      %p116 = por %p114, %p115
      %p117 = scmp.ne.s32.totalorder %s105, %s106
      %p118 = scmp.eq.s32.totalorder %s33, 1
      %p119 = por %p117, %p118
      %p121 = scmp.ne.s32.totalorder %s106, %s120
      %p122 = scmp.eq.s32.totalorder %s33, 0
      %p123 = por %p121, %p122
      %s125 = sadd.s32 %s124, 1
      %p128 = scmp.eq.s32.totalorder %s27, 1
      %p129 = scmp.ne.s32.totalorder %s124, %s126
      %p130 = scmp.eq.s32.totalorder %s27, 0
      %p131 = por %p129, %p130
      %p132 = scmp.ne.s32.totalorder %s124, %s126
      %p133 = scmp.eq.s32.totalorder %s32, 1
      %p134 = por %p132, %p133
      %p135 = scmp.ne.s32.totalorder %s126, %s127
      %p136 = scmp.eq.s32.totalorder %s32, 0
      %p137 = por %p135, %p136
      %p138 = scmp.ne.s32.totalorder %s126, %s127
      %p139 = scmp.eq.s32.totalorder %s33, 1
      %p140 = por %p138, %p139
      %p142 = scmp.ne.s32.totalorder %s127, %s141
      %p143 = scmp.eq.s32.totalorder %s33, 0
      %p144 = por %p142, %p143
      %s146 = sadd.s32 %s145, 1
      %p149 = scmp.eq.s32.totalorder %s27, 1
      %p150 = scmp.ne.s32.totalorder %s145, %s147
      %p151 = scmp.eq.s32.totalorder %s27, 0
      %p152 = por %p150, %p151
      %p153 = scmp.ne.s32.totalorder %s145, %s147
      %p154 = scmp.eq.s32.totalorder %s32, 1
      %p155 = por %p153, %p154
      %p156 = scmp.ne.s32.totalorder %s147, %s148
      %p157 = scmp.eq.s32.totalorder %s32, 0
      %p158 = por %p156, %p157
      %p159 = scmp.ne.s32.totalorder %s147, %s148
      %p160 = scmp.eq.s32.totalorder %s33, 1
      %p161 = por %p159, %p160
      %p163 = scmp.ne.s32.totalorder %s148, %s162
      %p164 = scmp.eq.s32.totalorder %s33, 0
      %p165 = por %p163, %p164
      %s166 = ssub.s32 %s34, %s46
      %s167 = ssub.s32 %s35, %s42
      %s168 = sor.u32 %s166, %s167
      %p169 = scmp.eq.s32.totalorder %s168, 0
      %s171 = sadd.s32 %s170, 1
      %s172 = scalar_select %p169, %s170, %s171
      %p175 = pneg %p169
      %p176 = scmp.eq.s32.totalorder %s27, 1
      %p177 = por %p175, %p176
      %p178 = scmp.ne.s32.totalorder %s170, %s173
      %p179 = scmp.eq.s32.totalorder %s27, 0
      %p180 = por %p178, %p179
      %p181 = scmp.ne.s32.totalorder %s170, %s173
      %p182 = scmp.eq.s32.totalorder %s32, 1
      %p183 = por %p181, %p182
      %p184 = scmp.ne.s32.totalorder %s173, %s174
      %p185 = scmp.eq.s32.totalorder %s32, 0
      %p186 = por %p184, %p185
      %p187 = scmp.ne.s32.totalorder %s173, %s174
      %p188 = scmp.eq.s32.totalorder %s33, 1
      %p189 = por %p187, %p188
      %p191 = scmp.ne.s32.totalorder %s174, %s190
      %p192 = scmp.eq.s32.totalorder %s33, 0
      %p193 = por %p191, %p192
      %s194 = ssub.s32 %s34, %s46
      %s195 = ssub.s32 %s35, %s42
      %s196 = sor.u32 %s194, %s195
      %p197 = scmp.eq.s32.totalorder %s196, 0
      %s199 = sadd.s32 %s198, 1
      %s200 = scalar_select %p197, %s198, %s199
      %p203 = pneg %p197
      %p204 = scmp.eq.s32.totalorder %s27, 1
      %p205 = por %p203, %p204
      %p206 = scmp.ne.s32.totalorder %s198, %s201
      %p207 = scmp.eq.s32.totalorder %s27, 0
      %p208 = por %p206, %p207
      %p209 = scmp.ne.s32.totalorder %s198, %s201
      %p210 = scmp.eq.s32.totalorder %s32, 1
      %p211 = por %p209, %p210
      %p212 = scmp.ne.s32.totalorder %s201, %s202
      %p213 = scmp.eq.s32.totalorder %s32, 0
      %p214 = por %p212, %p213
      %p215 = scmp.ne.s32.totalorder %s201, %s202
      %p216 = scmp.eq.s32.totalorder %s33, 1
      %p217 = por %p215, %p216
      %p219 = scmp.ne.s32.totalorder %s202, %s218
      %p220 = scmp.eq.s32.totalorder %s33, 0
      %p221 = por %p219, %p220
      %s222 = ssub.s32 %s34, %s46
      %s223 = ssub.s32 %s35, %s42
      %s224 = sor.u32 %s222, %s223
      %p225 = scmp.eq.s32.totalorder %s224, 0
      %s227 = sadd.s32 %s226, 1
      %s228 = scalar_select %p225, %s226, %s227
      %p231 = pneg %p225
      %p232 = scmp.eq.s32.totalorder %s27, 1
      %p233 = por %p231, %p232
      %p234 = scmp.ne.s32.totalorder %s226, %s229
      %p235 = scmp.eq.s32.totalorder %s27, 0
      %p236 = por %p234, %p235
      %p237 = scmp.ne.s32.totalorder %s226, %s229
      %p238 = scmp.eq.s32.totalorder %s32, 1
      %p239 = por %p237, %p238
      %p240 = scmp.ne.s32.totalorder %s229, %s230
      %p241 = scmp.eq.s32.totalorder %s32, 0
      %p242 = por %p240, %p241
      %p243 = scmp.ne.s32.totalorder %s229, %s230
      %p244 = scmp.eq.s32.totalorder %s33, 1
      %p245 = por %p243, %p244
      %p247 = scmp.ne.s32.totalorder %s230, %s246
      %p248 = scmp.eq.s32.totalorder %s33, 0
      %p249 = por %p247, %p248
      %p250 = scmp.le.s32.totalorder 1, %s27
      %p251 = scmp.lt.s32.totalorder %s27, 3
      %p252 = pnand %p250, %p251
      %p253 = pneg %p252
      // Predicated region
      $region9: #{tpu_custom_call.1} parent=5 // pred_check
        _
      $region10: #{tpu_custom_call.1} parent=5 // pred_check_branch
        %255 = sbr.rel (%p252) target = $region12
      $region11: #{tpu_custom_call.1} parent=5 // pred_region
        %s256 = ssub.s32 %s27, 1
        // Predicated region
        $region13: #{tpu_custom_call.1} parent=11 // pred_check
          %p257 = pneg %p116
        $region14: #{tpu_custom_call.1} parent=11 // pred_check_branch
          %259 = sbr.rel (%p257) target = $region16
        $region15: #{tpu_custom_call.1} parent=11 // pred_region
          %s261 = ssub.s32 1024, 1024
          %262 = vsyncadd [#allocation6], %s261
          %s263 = sshll.u32 [#allocation7], 4
          %s264 = int_to_ptr.vmem [resolvable:$true] %s263
          %269 = dma.hbm_to_vmem [thread:$0]  %s2, 1024, %s264, [#allocation6], 64, 64, 4
        $region16: #{tpu_custom_call.1} parent=11 // pred_fallthru
          _
        // Predicated region
        $region17: #{tpu_custom_call.1} parent=11 // pred_check
          %p270 = pneg %p137
        $region18: #{tpu_custom_call.1} parent=11 // pred_check_branch
          %272 = sbr.rel (%p270) target = $region20
        $region19: #{tpu_custom_call.1} parent=11 // pred_region
          %s274 = ssub.s32 1024, 1024
          %275 = vsyncadd [#allocation9], %s274
          %s276 = sshll.u32 [#allocation8], 4
          %s277 = int_to_ptr.vmem [resolvable:$true] %s276
          %282 = dma.hbm_to_vmem [thread:$0]  %s3, 1024, %s277, [#allocation9], 64, 64, 4
        $region20: #{tpu_custom_call.1} parent=11 // pred_fallthru
          _
        // Predicated region
        $region21: #{tpu_custom_call.1} parent=11 // pred_check
          %p283 = pneg %p158
        $region22: #{tpu_custom_call.1} parent=11 // pred_check_branch
          %285 = sbr.rel (%p283) target = $region24
        $region23: #{tpu_custom_call.1} parent=11 // pred_region
          %s287 = ssub.s32 1024, 1024
          %288 = vsyncadd [#allocation9], %s287
          %s289 = sshll.u32 [#allocation10], 4
          %s290 = int_to_ptr.vmem [resolvable:$true] %s289
          %295 = dma.hbm_to_vmem [thread:$0]  %s4, 1024, %s290, [#allocation9], 64, 64, 4
        $region24: #{tpu_custom_call.1} parent=11 // pred_fallthru
          _
      $region12: #{tpu_custom_call.1} parent=5 // pred_fallthru
        _
      %p296 = scmp.lt.s32.totalorder %s27, 2
      // Predicated region
      $region25: #{tpu_custom_call.1} parent=5 // pred_check
        %p297 = pneg %p296
      $region26: #{tpu_custom_call.1} parent=5 // pred_check_branch
        %299 = sbr.rel (%p297) target = $region28
      $region27: #{tpu_custom_call.1} parent=5 // pred_region
        // Predicated region
        $region29: #{tpu_custom_call.1} parent=27 // pred_check
          %p300 = pneg %p61
        $region30: #{tpu_custom_call.1} parent=27 // pred_check_branch
          %302 = sbr.rel (%p300) target = $region32
        $region31: #{tpu_custom_call.1} parent=27 // pred_region
          %s303 = sand.u32 %s51, 1
          %s304 = scalar_lea.sflag [#allocation3], %s303
          %s305 = sand.u32 %s51, 1
          %s306 = smul.addr %s305, 4
          %s307 = scalar_lea.vmem [#allocation2], %s306
          %s309 = ssub.s32 64, 64
          %310 = vsyncadd %s304, %s309
          %s311 = sadd.s32 %s35, %s34
          %s312 = smul.addr %s311, 64
          %s313 = scalar_lea.hbm %s0, %s312
          %s315 = sshll.u32 %s307, 4
          %s316 = int_to_ptr.vmem [resolvable:$true] %s315
          %318 = dma.hbm_to_vmem [thread:$0]  %s313, 64, %s316, %s304
        $region32: #{tpu_custom_call.1} parent=27 // pred_fallthru
          _
        // Predicated region
        $region33: #{tpu_custom_call.1} parent=27 // pred_check
          %p319 = pneg %p89
        $region34: #{tpu_custom_call.1} parent=27 // pred_check_branch
          %321 = sbr.rel (%p319) target = $region36
        $region35: #{tpu_custom_call.1} parent=27 // pred_region
          %s322 = sand.u32 %s27, 1
          %s323 = scalar_lea.sflag [#allocation6], %s322
          %s324 = sand.u32 %s79, 1
          %s325 = smul.addr %s324, 4
          %s326 = scalar_lea.vmem [#allocation5], %s325
          %s328 = ssub.s32 64, 64
          %329 = vsyncadd %s323, %s328
          %s330 = sadd.s32 %s35, %s34
          %s331 = smul.addr %s330, 64
          %s332 = scalar_lea.hbm %s1, %s331
          %s334 = sshll.u32 %s326, 4
          %s335 = int_to_ptr.vmem [resolvable:$true] %s334
          %337 = dma.hbm_to_vmem [thread:$0]  %s332, 64, %s335, %s323
        $region36: #{tpu_custom_call.1} parent=27 // pred_fallthru
          _
      $region28: #{tpu_custom_call.1} parent=5 // pred_fallthru
        _
      %p338 = scmp.le.s32.totalorder 1, %s27
      %p339 = scmp.lt.s32.totalorder %s27, 3
      %p340 = pnand %p338, %p339
      %p341 = pneg %p340
      // Predicated region
      $region37: #{tpu_custom_call.1} parent=5 // pred_check
        _
      $region38: #{tpu_custom_call.1} parent=5 // pred_check_branch
        %343 = sbr.rel (%p340) target = $region40
      $region39: #{tpu_custom_call.1} parent=5 // pred_region
        %s344 = ssub.s32 %s27, 1
        %s345 = sand.u32 %s54, 1
        %s346 = scalar_lea.sflag [#allocation3], %s345
        %s347 = sand.u32 %s54, 1
        %s348 = smul.addr %s347, 4
        %s349 = scalar_lea.vmem [#allocation2], %s348
        // Predicated region
        $region41: #{tpu_custom_call.1} parent=39 // pred_check
          %p350 = pneg %p67
        $region42: #{tpu_custom_call.1} parent=39 // pred_check_branch
          %352 = sbr.rel (%p350) target = $region44
        $region43: #{tpu_custom_call.1} parent=39 // pred_region
          %353 = dma.done %s346, 64
        $region44: #{tpu_custom_call.1} parent=39 // pred_fallthru
          _
        %s354 = sand.u32 %s32, 1
        %s355 = scalar_lea.sflag [#allocation6], %s354
        %s356 = sand.u32 %s82, 1
        %s357 = smul.addr %s356, 4
        %s358 = scalar_lea.vmem [#allocation5], %s357
        // Predicated region
        $region45: #{tpu_custom_call.1} parent=39 // pred_check
          %p359 = pneg %p95
        $region46: #{tpu_custom_call.1} parent=39 // pred_check_branch
          %361 = sbr.rel (%p359) target = $region48
        $region47: #{tpu_custom_call.1} parent=39 // pred_region
          %362 = dma.done %s355, 64
        $region48: #{tpu_custom_call.1} parent=39 // pred_fallthru
          _
        // Predicated region
        $region49: #{tpu_custom_call.1} parent=39 // pred_check
          %p363 = pneg %p116
        $region50: #{tpu_custom_call.1} parent=39 // pred_check_branch
          %365 = sbr.rel (%p363) target = $region52
        $region51: #{tpu_custom_call.1} parent=39 // pred_region
          %366 = dma.done [#allocation6], 1024
        $region52: #{tpu_custom_call.1} parent=39 // pred_fallthru
          _
        // Predicated region
        $region53: #{tpu_custom_call.1} parent=39 // pred_check
          %p367 = pneg %p137
        $region54: #{tpu_custom_call.1} parent=39 // pred_check_branch
          %369 = sbr.rel (%p367) target = $region56
        $region55: #{tpu_custom_call.1} parent=39 // pred_region
          %370 = dma.done [#allocation9], 1024
        $region56: #{tpu_custom_call.1} parent=39 // pred_fallthru
          _
        // Predicated region
        $region57: #{tpu_custom_call.1} parent=39 // pred_check
          %p371 = pneg %p158
        $region58: #{tpu_custom_call.1} parent=39 // pred_check_branch
          %373 = sbr.rel (%p371) target = $region60
        $region59: #{tpu_custom_call.1} parent=39 // pred_region
          %374 = dma.done [#allocation9], 1024
        $region60: #{tpu_custom_call.1} parent=39 // pred_fallthru
          _
        %s375 = sand.u32 %s54, 1
        %s376 = scalar_lea.sflag [#allocation3], %s375
        %s377 = sand.u32 %s54, 1
        %s378 = smul.addr %s377, 4
        %s379 = scalar_lea.vmem [#allocation2], %s378
        %p380 = pneg %p67
        %p381 = pneg %p64
        %s382 = sand.u32 %s32, 1
        %s383 = scalar_lea.sflag [#allocation6], %s382
        %s384 = sand.u32 %s82, 1
        %s385 = smul.addr %s384, 4
        %s386 = scalar_lea.vmem [#allocation5], %s385
        %p387 = pneg %p95
        %p388 = pneg %p92
        %p389 = pneg %p116
        %p390 = pneg %p113
        %p391 = pneg %p137
        %p392 = pneg %p134
        %p393 = pneg %p158
        %p394 = pneg %p155
        %p395 = pneg %p186
        %p396 = pneg %p183
        %s397 = sand.u32 %s173, 1
        %s398 = scalar_lea.sflag [#allocation4], %s397
        %s399 = sand.u32 %s173, 1
        %s400 = smul.addr %s399, 4
        %s401 = scalar_lea.vmem [#allocation11], %s400
        %p402 = pneg %p214
        %p403 = pneg %p211
        %s404 = sand.u32 %s32, 1
        %s405 = scalar_lea.sflag [#allocation13], %s404
        %s406 = sand.u32 %s201, 1
        %s407 = smul.addr %s406, 4
        %s408 = scalar_lea.vmem [#allocation12], %s407
        %p409 = pneg %p242
        %p410 = pneg %p239
        %s411 = sand.u32 %s32, 1
        %s412 = scalar_lea.sflag [#allocation13], %s411
        %s413 = sand.u32 %s229, 1
        %s414 = smul.addr %s413, 4
        %s415 = scalar_lea.vmem [#allocation14], %s414
        %v417 = vld [vmem:[%s349] sm:$0xf]
        %v418 = vld [vmem:[%s358] sm:$0xf]
        %v419 = vld [vmem:[#allocation7] sm:$0xf]
        %v420 = vld [vmem:[#allocation7 + $0x4] sm:$0xf]
        %v421 = vld [vmem:[#allocation7 + $0x8] sm:$0xf]
        %v422 = vld [vmem:[#allocation7 + $0xc] sm:$0xf]
        %v423 = vld [vmem:[#allocation7 + $0x10] sm:$0xf]
        %v424 = vld [vmem:[#allocation7 + $0x14] sm:$0xf]
        %v425 = vld [vmem:[#allocation7 + $0x18] sm:$0xf]
        %v426 = vld [vmem:[#allocation7 + $0x1c] sm:$0xf]
        %v427 = vld [vmem:[#allocation7 + $0x20] sm:$0xf]
        %v428 = vld [vmem:[#allocation7 + $0x24] sm:$0xf]
        %v429 = vld [vmem:[#allocation7 + $0x28] sm:$0xf]
        %v430 = vld [vmem:[#allocation7 + $0x2c] sm:$0xf]
        %v431 = vld [vmem:[#allocation7 + $0x30] sm:$0xf]
        %v432 = vld [vmem:[#allocation7 + $0x34] sm:$0xf]
        %v433 = vld [vmem:[#allocation7 + $0x38] sm:$0xf]
        %v434 = vld [vmem:[#allocation7 + $0x3c] sm:$0xf]
        %v451 = vunpack.c.l.b16 %v419
        %v452 = vunpack.c.l.b16 %v420
        %v453 = vunpack.c.l.b16 %v421
        %v454 = vunpack.c.l.b16 %v422
        %v455 = vunpack.c.l.b16 %v423
        %v456 = vunpack.c.l.b16 %v424
        %v457 = vunpack.c.l.b16 %v425
        %v458 = vunpack.c.l.b16 %v426
        %v459 = vunpack.c.l.b16 %v427
        %v460 = vunpack.c.l.b16 %v428
        %v461 = vunpack.c.l.b16 %v429
        %v462 = vunpack.c.l.b16 %v430
        %v463 = vunpack.c.l.b16 %v431
        %v464 = vunpack.c.l.b16 %v432
        %v465 = vunpack.c.l.b16 %v433
        %v466 = vunpack.c.l.b16 %v434
        %v467 = vpack.c.b16 %v452, %v451
        %v468 = vpack.c.b16 %v454, %v453
        %v469 = vpack.c.b16 %v456, %v455
        %v470 = vpack.c.b16 %v458, %v457
        %v471 = vpack.c.b16 %v460, %v459
        %v472 = vpack.c.b16 %v462, %v461
        %v473 = vpack.c.b16 %v464, %v463
        %v474 = vpack.c.b16 %v466, %v465
        %483 = vmatprep.subr.bf16.mxu0 0
        %484 = vmatpush1.bf16.msra.mxu0 %v467
        %485 = vmatprep.subr.bf16.mxu0 0
        %486 = vmatpush1.bf16.msra.mxu0 %v468
        %487 = vmatprep.subr.bf16.mxu0 0
        %488 = vmatpush1.bf16.msra.mxu0 %v469
        %489 = vmatprep.subr.bf16.mxu0 0
        %490 = vmatpush1.bf16.msra.mxu0 %v470
        %491 = vmatprep.subr.bf16.mxu0 0
        %492 = vmatpush1.bf16.msra.mxu0 %v471
        %493 = vmatprep.subr.bf16.mxu0 0
        %494 = vmatpush1.bf16.msra.mxu0 %v472
        %495 = vmatprep.subr.bf16.mxu0 0
        %496 = vmatpush1.bf16.msra.mxu0 %v473
        %497 = vmatprep.subr.bf16.mxu0 0
        %498 = vmatpush1.bf16.msra.mxu0 %v474
        %499 = vmatprep.subr.bf16.mxu0 0
        %500 = vmatpush1.bf16.msra.mxu0 0
        %501 = vmatprep.subr.bf16.mxu0 0
        %502 = vmatpush1.bf16.msra.mxu0 0
        %503 = vmatprep.subr.bf16.mxu0 0
        %504 = vmatpush1.bf16.msra.mxu0 0
        %505 = vmatprep.subr.bf16.mxu0 0
        %506 = vmatpush1.bf16.msra.mxu0 0
        %507 = vmatprep.subr.bf16.mxu0 0
        %508 = vmatpush1.bf16.msra.mxu0 0
        %509 = vmatprep.subr.bf16.mxu0 0
        %510 = vmatpush1.bf16.msra.mxu0 0
        %511 = vmatprep.subr.bf16.mxu0 0
        %512 = vmatpush1.bf16.msra.mxu0 0
        %513 = vmatprep.subr.bf16.mxu0 0
        %514 = vmatpush1.bf16.msra.mxu0 0
        %515 = vmatprep.mubr.bf16.mxu0 0
        %516 = vmatmul.mubr.bf16.gmra.mrb[0].mxu0 %v417
        %v517 = vpop.f32.mrb[0].mxu0
        %v518 = vadd.f32 0.0, %v517
        %v519 = vpop.f32.mrb[0].mxu0
        %v520 = vpop.f32.mrb[0].mxu0
        %v521 = vpop.f32.mrb[0].mxu0
        %522 = vdwg.mxu0
        %v523 = vpack.c.bf16 %v518, %v518
        %524 = vst [vmem:[%s401] sm:$0xf] %v523
        %v525 = vld [vmem:[#allocation8] sm:$0xf]
        %v526 = vld [vmem:[#allocation8 + $0x4] sm:$0xf]
        %v527 = vld [vmem:[#allocation8 + $0x8] sm:$0xf]
        %v528 = vld [vmem:[#allocation8 + $0xc] sm:$0xf]
        %v529 = vld [vmem:[#allocation8 + $0x10] sm:$0xf]
        %v530 = vld [vmem:[#allocation8 + $0x14] sm:$0xf]
        %v531 = vld [vmem:[#allocation8 + $0x18] sm:$0xf]
        %v532 = vld [vmem:[#allocation8 + $0x1c] sm:$0xf]
        %v533 = vld [vmem:[#allocation8 + $0x20] sm:$0xf]
        %v534 = vld [vmem:[#allocation8 + $0x24] sm:$0xf]
        %v535 = vld [vmem:[#allocation8 + $0x28] sm:$0xf]
        %v536 = vld [vmem:[#allocation8 + $0x2c] sm:$0xf]
        %v537 = vld [vmem:[#allocation8 + $0x30] sm:$0xf]
        %v538 = vld [vmem:[#allocation8 + $0x34] sm:$0xf]
        %v539 = vld [vmem:[#allocation8 + $0x38] sm:$0xf]
        %v540 = vld [vmem:[#allocation8 + $0x3c] sm:$0xf]
        %v557 = vunpack.c.l.b16 %v525
        %v558 = vunpack.c.l.b16 %v526
        %v559 = vunpack.c.l.b16 %v527
        %v560 = vunpack.c.l.b16 %v528
        %v561 = vunpack.c.l.b16 %v529
        %v562 = vunpack.c.l.b16 %v530
        %v563 = vunpack.c.l.b16 %v531
        %v564 = vunpack.c.l.b16 %v532
        %v565 = vunpack.c.l.b16 %v533
        %v566 = vunpack.c.l.b16 %v534
        %v567 = vunpack.c.l.b16 %v535
        %v568 = vunpack.c.l.b16 %v536
        %v569 = vunpack.c.l.b16 %v537
        %v570 = vunpack.c.l.b16 %v538
        %v571 = vunpack.c.l.b16 %v539
        %v572 = vunpack.c.l.b16 %v540
        %v573 = vpack.c.b16 %v558, %v557
        %v574 = vpack.c.b16 %v560, %v559
        %v575 = vpack.c.b16 %v562, %v561
        %v576 = vpack.c.b16 %v564, %v563
        %v577 = vpack.c.b16 %v566, %v565
        %v578 = vpack.c.b16 %v568, %v567
        %v579 = vpack.c.b16 %v570, %v569
        %v580 = vpack.c.b16 %v572, %v571
        %589 = vmatprep.subr.bf16.mxu0 0
        %590 = vmatpush1.bf16.msra.mxu0 %v573
        %591 = vmatprep.subr.bf16.mxu0 0
        %592 = vmatpush1.bf16.msra.mxu0 %v574
        %593 = vmatprep.subr.bf16.mxu0 0
        %594 = vmatpush1.bf16.msra.mxu0 %v575
        %595 = vmatprep.subr.bf16.mxu0 0
        %596 = vmatpush1.bf16.msra.mxu0 %v576
        %597 = vmatprep.subr.bf16.mxu0 0
        %598 = vmatpush1.bf16.msra.mxu0 %v577
        %599 = vmatprep.subr.bf16.mxu0 0
        %600 = vmatpush1.bf16.msra.mxu0 %v578
        %601 = vmatprep.subr.bf16.mxu0 0
        %602 = vmatpush1.bf16.msra.mxu0 %v579
        %603 = vmatprep.subr.bf16.mxu0 0
        %604 = vmatpush1.bf16.msra.mxu0 %v580
        %605 = vmatprep.subr.bf16.mxu0 0
        %606 = vmatpush1.bf16.msra.mxu0 0
        %607 = vmatprep.subr.bf16.mxu0 0
        %608 = vmatpush1.bf16.msra.mxu0 0
        %609 = vmatprep.subr.bf16.mxu0 0
        %610 = vmatpush1.bf16.msra.mxu0 0
        %611 = vmatprep.subr.bf16.mxu0 0
        %612 = vmatpush1.bf16.msra.mxu0 0
        %613 = vmatprep.subr.bf16.mxu0 0
        %614 = vmatpush1.bf16.msra.mxu0 0
        %615 = vmatprep.subr.bf16.mxu0 0
        %616 = vmatpush1.bf16.msra.mxu0 0
        %617 = vmatprep.subr.bf16.mxu0 0
        %618 = vmatpush1.bf16.msra.mxu0 0
        %619 = vmatprep.subr.bf16.mxu0 0
        %620 = vmatpush1.bf16.msra.mxu0 0
        %621 = vmatprep.mubr.bf16.mxu0 0
        %622 = vmatmul.mubr.bf16.gmra.mrb[0].mxu0 %v418
        %v623 = vpop.f32.mrb[0].mxu0
        %v624 = vadd.f32 0.0, %v623
        %v625 = vpop.f32.mrb[0].mxu0
        %v626 = vpop.f32.mrb[0].mxu0
        %v627 = vpop.f32.mrb[0].mxu0
        %628 = vdwg.mxu0
        %v629 = vpack.c.bf16 %v624, %v624
        %630 = vst [vmem:[%s408] sm:$0xf] %v629
        %v631 = vld [vmem:[#allocation10] sm:$0xf]
        %v632 = vld [vmem:[#allocation10 + $0x4] sm:$0xf]
        %v633 = vld [vmem:[#allocation10 + $0x8] sm:$0xf]
        %v634 = vld [vmem:[#allocation10 + $0xc] sm:$0xf]
        %v635 = vld [vmem:[#allocation10 + $0x10] sm:$0xf]
        %v636 = vld [vmem:[#allocation10 + $0x14] sm:$0xf]
        %v637 = vld [vmem:[#allocation10 + $0x18] sm:$0xf]
        %v638 = vld [vmem:[#allocation10 + $0x1c] sm:$0xf]
        %v639 = vld [vmem:[#allocation10 + $0x20] sm:$0xf]
        %v640 = vld [vmem:[#allocation10 + $0x24] sm:$0xf]
        %v641 = vld [vmem:[#allocation10 + $0x28] sm:$0xf]
        %v642 = vld [vmem:[#allocation10 + $0x2c] sm:$0xf]
        %v643 = vld [vmem:[#allocation10 + $0x30] sm:$0xf]
        %v644 = vld [vmem:[#allocation10 + $0x34] sm:$0xf]
        %v645 = vld [vmem:[#allocation10 + $0x38] sm:$0xf]
        %v646 = vld [vmem:[#allocation10 + $0x3c] sm:$0xf]
        %v663 = vunpack.c.l.b16 %v631
        %v664 = vunpack.c.l.b16 %v632
        %v665 = vunpack.c.l.b16 %v633
        %v666 = vunpack.c.l.b16 %v634
        %v667 = vunpack.c.l.b16 %v635
        %v668 = vunpack.c.l.b16 %v636
        %v669 = vunpack.c.l.b16 %v637
        %v670 = vunpack.c.l.b16 %v638
        %v671 = vunpack.c.l.b16 %v639
        %v672 = vunpack.c.l.b16 %v640
        %v673 = vunpack.c.l.b16 %v641
        %v674 = vunpack.c.l.b16 %v642
        %v675 = vunpack.c.l.b16 %v643
        %v676 = vunpack.c.l.b16 %v644
        %v677 = vunpack.c.l.b16 %v645
        %v678 = vunpack.c.l.b16 %v646
        %v679 = vpack.c.b16 %v664, %v663
        %v680 = vpack.c.b16 %v666, %v665
        %v681 = vpack.c.b16 %v668, %v667
        %v682 = vpack.c.b16 %v670, %v669
        %v683 = vpack.c.b16 %v672, %v671
        %v684 = vpack.c.b16 %v674, %v673
        %v685 = vpack.c.b16 %v676, %v675
        %v686 = vpack.c.b16 %v678, %v677
        %695 = vmatprep.subr.bf16.mxu0 0
        %696 = vmatpush1.bf16.msra.mxu0 %v679
        %697 = vmatprep.subr.bf16.mxu0 0
        %698 = vmatpush1.bf16.msra.mxu0 %v680
        %699 = vmatprep.subr.bf16.mxu0 0
        %700 = vmatpush1.bf16.msra.mxu0 %v681
        %701 = vmatprep.subr.bf16.mxu0 0
        %702 = vmatpush1.bf16.msra.mxu0 %v682
        %703 = vmatprep.subr.bf16.mxu0 0
        %704 = vmatpush1.bf16.msra.mxu0 %v683
        %705 = vmatprep.subr.bf16.mxu0 0
        %706 = vmatpush1.bf16.msra.mxu0 %v684
        %707 = vmatprep.subr.bf16.mxu0 0
        %708 = vmatpush1.bf16.msra.mxu0 %v685
        %709 = vmatprep.subr.bf16.mxu0 0
        %710 = vmatpush1.bf16.msra.mxu0 %v686
        %711 = vmatprep.subr.bf16.mxu0 0
        %712 = vmatpush1.bf16.msra.mxu0 0
        %713 = vmatprep.subr.bf16.mxu0 0
        %714 = vmatpush1.bf16.msra.mxu0 0
        %715 = vmatprep.subr.bf16.mxu0 0
        %716 = vmatpush1.bf16.msra.mxu0 0
        %717 = vmatprep.subr.bf16.mxu0 0
        %718 = vmatpush1.bf16.msra.mxu0 0
        %719 = vmatprep.subr.bf16.mxu0 0
        %720 = vmatpush1.bf16.msra.mxu0 0
        %721 = vmatprep.subr.bf16.mxu0 0
        %722 = vmatpush1.bf16.msra.mxu0 0
        %723 = vmatprep.subr.bf16.mxu0 0
        %724 = vmatpush1.bf16.msra.mxu0 0
        %725 = vmatprep.subr.bf16.mxu0 0
        %726 = vmatpush1.bf16.msra.mxu0 0
        %727 = vmatprep.mubr.bf16.mxu0 0
        %728 = vmatmul.mubr.bf16.gmra.mrb[0].mxu0 %v418
        %v729 = vpop.f32.mrb[0].mxu0
        %v730 = vadd.f32 0.0, %v729
        %v731 = vpop.f32.mrb[0].mxu0
        %v732 = vpop.f32.mrb[0].mxu0
        %v733 = vpop.f32.mrb[0].mxu0
        %734 = vdwg.mxu0
        %v735 = vpack.c.bf16 %v730, %v730
        %736 = vst [vmem:[%s415] sm:$0xf] %v735
        %s737 = sand.u32 %s173, 1
        %s738 = scalar_lea.sflag [#allocation4], %s737
        %s739 = sand.u32 %s173, 1
        %s740 = smul.addr %s739, 4
        %s741 = scalar_lea.vmem [#allocation11], %s740
        %s742 = sand.u32 %s32, 1
        %s743 = scalar_lea.sflag [#allocation13], %s742
        %s744 = sand.u32 %s201, 1
        %s745 = smul.addr %s744, 4
        %s746 = scalar_lea.vmem [#allocation12], %s745
        %s747 = sand.u32 %s32, 1
        %s748 = scalar_lea.sflag [#allocation13], %s747
        %s749 = sand.u32 %s229, 1
        %s750 = smul.addr %s749, 4
        %s751 = scalar_lea.vmem [#allocation14], %s750
        // Predicated region
        $region61: #{tpu_custom_call.1} parent=39 // pred_check
          %p752 = pneg %p183
        $region62: #{tpu_custom_call.1} parent=39 // pred_check_branch
          %754 = sbr.rel (%p752) target = $region64
        $region63: #{tpu_custom_call.1} parent=39 // pred_region
          %s756 = ssub.s32 64, 64
          %757 = vsyncadd %s738, %s756
          %s758 = sadd.s32 %s37, %s36
          %s759 = smul.addr %s758, 64
          %s760 = scalar_lea.hbm %s5, %s759
          %s762 = sshll.u32 %s741, 4
          %s763 = int_to_ptr.vmem [resolvable:$true] %s762
          %765 = dma.vmem_to_hbm [thread:$0]  %s763, 64, %s760, %s738
        $region64: #{tpu_custom_call.1} parent=39 // pred_fallthru
          _
        // Predicated region
        $region65: #{tpu_custom_call.1} parent=39 // pred_check
          %p766 = pneg %p211
        $region66: #{tpu_custom_call.1} parent=39 // pred_check_branch
          %768 = sbr.rel (%p766) target = $region68
        $region67: #{tpu_custom_call.1} parent=39 // pred_region
          %s770 = ssub.s32 64, 64
          %771 = vsyncadd %s743, %s770
          %s772 = sadd.s32 %s37, %s36
          %s773 = smul.addr %s772, 64
          %s774 = scalar_lea.hbm %s6, %s773
          %s776 = sshll.u32 %s746, 4
          %s777 = int_to_ptr.vmem [resolvable:$true] %s776
          %779 = dma.vmem_to_hbm [thread:$0]  %s777, 64, %s774, %s743
        $region68: #{tpu_custom_call.1} parent=39 // pred_fallthru
          _
        // Predicated region
        $region69: #{tpu_custom_call.1} parent=39 // pred_check
          %p780 = pneg %p239
        $region70: #{tpu_custom_call.1} parent=39 // pred_check_branch
          %782 = sbr.rel (%p780) target = $region72
        $region71: #{tpu_custom_call.1} parent=39 // pred_region
          %s784 = ssub.s32 64, 64
          %785 = vsyncadd %s748, %s784
          %s786 = sadd.s32 %s37, %s36
          %s787 = smul.addr %s786, 64
          %s788 = scalar_lea.hbm %s7, %s787
          %s790 = sshll.u32 %s751, 4
          %s791 = int_to_ptr.vmem [resolvable:$true] %s790
          %793 = dma.vmem_to_hbm [thread:$0]  %s791, 64, %s788, %s748
        $region72: #{tpu_custom_call.1} parent=39 // pred_fallthru
          _
      $region40: #{tpu_custom_call.1} parent=5 // pred_fallthru
        _
      %p794 = scmp.le.s32.totalorder 2, %s27
      // Predicated region
      $region73: #{tpu_custom_call.1} parent=5 // pred_check
        %p795 = pneg %p794
      $region74: #{tpu_custom_call.1} parent=5 // pred_check_branch
        %797 = sbr.rel (%p795) target = $region76
      $region75: #{tpu_custom_call.1} parent=5 // pred_region
        %s798 = ssub.s32 %s27, 2
        // Predicated region
        $region77: #{tpu_custom_call.1} parent=75 // pred_check
          %p799 = pneg %p189
        $region78: #{tpu_custom_call.1} parent=75 // pred_check_branch
          %801 = sbr.rel (%p799) target = $region80
        $region79: #{tpu_custom_call.1} parent=75 // pred_region
          %s802 = sand.u32 %s174, 1
          %s803 = scalar_lea.sflag [#allocation4], %s802
          %s804 = sand.u32 %s174, 1
          %s805 = smul.addr %s804, 4
          %s806 = scalar_lea.vmem [#allocation11], %s805
          %807 = dma.done %s803, 64
        $region80: #{tpu_custom_call.1} parent=75 // pred_fallthru
          _
        // Predicated region
        $region81: #{tpu_custom_call.1} parent=75 // pred_check
          %p808 = pneg %p217
        $region82: #{tpu_custom_call.1} parent=75 // pred_check_branch
          %810 = sbr.rel (%p808) target = $region84
        $region83: #{tpu_custom_call.1} parent=75 // pred_region
          %s811 = sand.u32 %s33, 1
          %s812 = scalar_lea.sflag [#allocation13], %s811
          %s813 = sand.u32 %s202, 1
          %s814 = smul.addr %s813, 4
          %s815 = scalar_lea.vmem [#allocation12], %s814
          %816 = dma.done %s812, 64
        $region84: #{tpu_custom_call.1} parent=75 // pred_fallthru
          _
        // Predicated region
        $region85: #{tpu_custom_call.1} parent=75 // pred_check
          %p817 = pneg %p245
        $region86: #{tpu_custom_call.1} parent=75 // pred_check_branch
          %819 = sbr.rel (%p817) target = $region88
        $region87: #{tpu_custom_call.1} parent=75 // pred_region
          %s820 = sand.u32 %s33, 1
          %s821 = scalar_lea.sflag [#allocation13], %s820
          %s822 = sand.u32 %s230, 1
          %s823 = smul.addr %s822, 4
          %s824 = scalar_lea.vmem [#allocation14], %s823
          %825 = dma.done %s821, 64
        $region88: #{tpu_custom_call.1} parent=75 // pred_fallthru
          _
      $region76: #{tpu_custom_call.1} parent=5 // pred_fallthru
        _
    $region6: #{tpu_custom_call.1} parent=1 // loop_footer
      %s31 = sadd.s32 1, %s27
    $region7: #{tpu_custom_call.1} parent=1 // loop_footer_branch
      %26 = sbr.rel target = $region3
    $region8: #{tpu_custom_call.1} parent=1 // loop_exit
      _
    %826 = vsyncpa [#allocation3], 1
    %s827 = scalar_lea.sflag [#allocation3], 1
    %828 = vsyncpa %s827, 1
    %829 = vsyncpa [#allocation6], 1
    %s830 = scalar_lea.sflag [#allocation6], 1
    %831 = vsyncpa %s830, 1
    %832 = vsyncpa [#allocation9], 1
    %833 = vsyncpa [#allocation4], 1
    %s834 = scalar_lea.sflag [#allocation4], 1
    %835 = vsyncpa %s834, 1
    %836 = vsyncpa [#allocation13], 1
    %s837 = scalar_lea.sflag [#allocation13], 1
    %838 = vsyncpa %s837, 1

</llo_original>
